<compile_context>
chip_gen: v6e
topology: v6e:2x2x1
jax: 0.10.0
libtpu: 0.0.40
codegen_flags: <defaults>
</compile_context>

<pallas_src>
import functools
import math

import jax
import jax.numpy as jnp
from jax import lax
from jax.experimental import pallas as pl
from jax.experimental.pallas import tpu as pltpu


_MXU_MIN_CONTRACTION = 64  # below this a 1x1 conv runs as VPU broadcast-MACs
_N_ACC = 4                 # independent accumulator chains for VPU MAC loops


def _gelu_exact(x):
    # PyTorch nn.GELU() default = exact erf formulation.
    return 0.5 * x * (1.0 + lax.erf(x * (1.0 / math.sqrt(2.0))))


@functools.lru_cache(maxsize=None)
def _roll_matches_jnp_roll() -> bool:
    """One-time probe of pltpu.roll's rotate direction (documented == jnp.roll).

    The main kernel derives its static tap shifts from this, so it is correct
    regardless of the rotate-direction convention of the installed jax version.
    """
    def probe(x_ref, o_ref):
        o_ref[...] = pltpu.roll(x_ref[...], 1, 1)

    x = jnp.broadcast_to(jnp.arange(128, dtype=jnp.float32), (8, 128))
    out = pl.pallas_call(
        probe, out_shape=jax.ShapeDtypeStruct((8, 128), jnp.float32))(x)
    # jnp.roll(x, 1, axis=1)[0, 1] == x[0, 0] == 0
    return bool(out[0, 1] == 0.0)


def _vpu_matmul(w, x, n_in):
    """(O, n_in) @ (n_in, HW) -> (O, HW) via broadcast-MACs, multi-chain accum.

    Used when the contraction dim is too small for the MXU to be worthwhile.
    Keeps _N_ACC independent partial sums so the VALUs are not serialized on a
    single add chain.
    """
    accs = []
    for c in range(n_in):
        term = w[:, c:c + 1] * x[c:c + 1, :]
        if c < _N_ACC:
            accs.append(term)
        else:
            accs[c % _N_ACC] = accs[c % _N_ACC] + term
    out = accs[0]
    for a in accs[1:]:
        out = out + a
    return out


def inverted_residual_kernel(
    x_ref, w1_ref, b1_ref, dwk_ref, dwb_ref, w2_ref, b2_ref, mask_ref,
    out_ref, *, C, C4, HW, K, tap_shifts, use_mxu_pw1, use_mxu_pw2,
):
    x = x_ref[0].astype(jnp.float32)               # (C, HW), lanes = H*W

    # ---- pw1 (1x1 conv, BN1 folded) + GELU -------------------------------
    if use_mxu_pw1:
        y = jnp.dot(w1_ref[...].astype(jnp.bfloat16), x.astype(jnp.bfloat16),
                    preferred_element_type=jnp.float32)
    else:                                          # tiny contraction -> VPU MAC
        y = _vpu_matmul(w1_ref[...], x, C)         # w1: (C4, C)
    y = _gelu_exact(y + b1_ref[...])               # (C4, HW)

    # ---- depthwise KxK conv (BN2 folded), 'same' via roll + masks ---------
    dwk = dwk_ref[...]                             # (C4, K*K)
    masks = mask_ref[...]                          # (K*K, HW), {0,1}
    center = (K * K) // 2                          # fully-valid tap (pad=1, K=3)
    z_acc = [None, None]                           # two interleaved add chains
    for t in range(K * K):
        s = tap_shifts[t]
        tap = y if s == 0 else pltpu.roll(y, s, 1)  # XLU lane rotation
        term = tap * dwk[:, t:t + 1]
        if t != center:
            term = term * masks[t:t + 1, :]        # zero out-of-image taps
        i = t & 1
        z_acc[i] = term if z_acc[i] is None else z_acc[i] + term
    z = _gelu_exact(z_acc[0] + z_acc[1] + dwb_ref[...])   # (C4, HW)

    # ---- pw2 (1x1 conv, BN3 + layer_scale folded) + residual --------------
    if use_mxu_pw2:
        o = jnp.dot(w2_ref[...].astype(jnp.bfloat16), z.astype(jnp.bfloat16),
                    preferred_element_type=jnp.float32)
    else:
        o = _vpu_matmul(w2_ref[...], z, C4)        # w2: (C, C4)
    out_ref[0] = (x + o + b2_ref[...]).astype(out_ref.dtype)


def inverted_residual(x_nchw, p, *, kernel=3):
    """x_nchw: (B, C, H, W) float32 -> (B, C, H, W). Eval-mode forward."""
    B, C, H, W = x_nchw.shape
    K = kernel
    # The module hard-codes padding=1, so only K=3 preserves the spatial shape
    # (required by the residual add).
    assert K == 3, "DepthWiseSeparable uses padding=1; only kernel=3 keeps H, W"
    pad = 1
    C4, HW = 4 * C, H * W

    f32 = jnp.float32
    s1, t1 = p["s1"].astype(f32), p["t1"].astype(f32)
    s2, t2 = p["s2"].astype(f32), p["t2"].astype(f32)
    s3, t3 = p["s3"].astype(f32), p["t3"].astype(f32)
    ls = p["ls"].astype(f32)

    # Fold BN (inference mode) and layer_scale into the conv weights / biases.
    w1f = (p["w1"].astype(f32) * s1[None, :]).T                       # (C4, C)
    b1f = (p["b1"].astype(f32) * s1 + t1).reshape(C4, 1)
    dwkf = (p["dwk"].astype(f32).reshape(K * K, C4) * s2[None, :]).T  # (C4, K*K)
    dwbf = (p["dwb"].astype(f32) * s2 + t2).reshape(C4, 1)
    w2f = p["w2"].astype(f32).T * (ls * s3)[:, None]                  # (C, C4)
    b2f = (ls * (s3 * p["b2"].astype(f32) + t3)).reshape(C, 1)

    # Per-tap shifts along the flattened H*W axis and out-of-image masks.
    matches = _roll_matches_jnp_roll()
    hh = jnp.arange(H)[:, None]
    ww = jnp.arange(W)[None, :]
    tap_shifts, mask_rows = [], []
    for dh in range(K):
        for dwc in range(K):
            off = (dh - pad) * W + (dwc - pad)       # input = p + off
            tap_shifts.append(int((-off if matches else off) % HW))
            mh = (hh + dh - pad >= 0) & (hh + dh - pad < H)
            mw = (ww + dwc - pad >= 0) & (ww + dwc - pad < W)
            mask_rows.append((mh & mw).astype(f32).reshape(HW))
    tap_shifts = tuple(tap_shifts)
    mask = jnp.stack(mask_rows, axis=0)                               # (K*K, HW)

    x = x_nchw.reshape(B, C, HW)   # NCHW -> (B, C, H*W): spatial on the lane axis

    kern = functools.partial(
        inverted_residual_kernel, C=C, C4=C4, HW=HW, K=K, tap_shifts=tap_shifts,
        use_mxu_pw1=C >= _MXU_MIN_CONTRACTION,
        use_mxu_pw2=C4 >= _MXU_MIN_CONTRACTION,
    )

    args = (x, w1f, b1f, dwkf, dwbf, w2f, b2f, mask)

    def const_spec(a):
        nd = a.ndim
        return pl.BlockSpec(a.shape, lambda b, _nd=nd: (0,) * _nd)

    in_specs = [pl.BlockSpec((1, C, HW), lambda b: (b, 0, 0))]
    in_specs += [const_spec(a) for a in args[1:]]

    out = pl.pallas_call(
        kern,
        out_shape=jax.ShapeDtypeStruct((B, C, HW), x.dtype),
        grid_spec=pltpu.PrefetchScalarGridSpec(
            num_scalar_prefetch=0,
            grid=(B,),
            in_specs=in_specs,
            out_specs=pl.BlockSpec((1, C, HW), lambda b: (b, 0, 0)),
        ),
        # Batch iterations are independent and no scratch persists across steps,
        # so the axis can be core-sharded on v7x; no-op on single-TC v5e/v6e.
        compiler_params=pltpu.CompilerParams(dimension_semantics=("parallel",)),
    )(*args)

    return out.reshape(B, C, H, W)


def make_params(key, dim, kernel=3, layer_scale_init_value=1e-05, eps=1e-05):
    """Deterministic synthetic params matching the PyTorch module's shapes."""
    C, C4, K = dim, 4 * dim, kernel
    ks = jax.random.split(key, 18)

    def bn(kg, kb, km, kv, n):
        gamma = 1.0 + 0.1 * jax.random.normal(kg, (n,), jnp.float32)
        beta = 0.1 * jax.random.normal(kb, (n,), jnp.float32)
        mean = 0.05 * jax.random.normal(km, (n,), jnp.float32)
        var = 1.0 + 0.1 * jax.random.uniform(kv, (n,), jnp.float32)
        s = gamma / jnp.sqrt(var + eps)
        t = beta - mean * s
        return s, t

    w1 = 0.2 * jax.random.normal(ks[0], (C, C4), jnp.float32)       # pw1: C -> 4C
    b1 = 0.1 * jax.random.normal(ks[1], (C4,), jnp.float32)
    s1, t1 = bn(ks[2], ks[3], ks[4], ks[5], C4)
    dwk = 0.2 * jax.random.normal(ks[6], (K, K, C4), jnp.float32)   # depthwise
    dwb = 0.1 * jax.random.normal(ks[7], (C4,), jnp.float32)
    s2, t2 = bn(ks[8], ks[9], ks[10], ks[11], C4)
    w2 = 0.2 * jax.random.normal(ks[12], (C4, C), jnp.float32)      # pw2: 4C -> C
    b2 = 0.1 * jax.random.normal(ks[13], (C,), jnp.float32)
    s3, t3 = bn(ks[14], ks[15], ks[16], ks[17], C)
    ls = layer_scale_init_value * jnp.ones((C,), jnp.float32)       # layer_scale_2
    return dict(w1=w1, b1=b1, s1=s1, t1=t1, dwk=dwk, dwb=dwb, s2=s2, t2=t2,
                w2=w2, b2=b2, s3=s3, t3=t3, ls=ls)


def reference(x_nchw, p):
    """Pure-JAX reference of the same (eval-mode) forward pass."""
    x = jnp.transpose(x_nchw, (0, 2, 3, 1))                     # NHWC
    y = jnp.einsum("bhwc,cd->bhwd", x, p["w1"]) + p["b1"]
    y = jax.nn.gelu(y * p["s1"] + p["t1"], approximate=False)
    rhs = p["dwk"][:, :, None, :]                               # (K, K, 1, C4)
    y = lax.conv_general_dilated(
        y, rhs, window_strides=(1, 1), padding=((1, 1), (1, 1)),
        dimension_numbers=("NHWC", "HWIO", "NHWC"),
        feature_group_count=p["dwk"].shape[-1],
    ) + p["dwb"]
    y = jax.nn.gelu(y * p["s2"] + p["t2"], approximate=False)
    o = jnp.einsum("bhwd,dc->bhwc", y, p["w2"]) + p["b2"]
    o = o * p["s3"] + p["t3"]
    out = x + p["ls"] * o
    return jnp.transpose(out, (0, 3, 1, 2))


if __name__ == "__main__":
    B, C, H, W = 2, 4, 16, 16
    KERNEL = 3
    key = jax.random.PRNGKey(0)
    kx, kp = jax.random.split(key)
    x = jax.random.normal(kx, (B, C, H, W), jnp.float32)
    # Use a non-degenerate layer scale so the DWS branch is actually visible to
    # the tolerance check (the module's 1e-5 default would hide it below atol).
    params = make_params(kp, C, KERNEL, layer_scale_init_value=0.1)

    out = jax.block_until_ready(inverted_residual(x, params, kernel=KERNEL))
    ref = jax.block_until_ready(reference(x, params))

    assert out.shape == (B, C, H, W) and out.dtype == jnp.float32
    max_err = float(jnp.max(jnp.abs(out - ref)))
    assert jnp.allclose(out, ref, atol=1e-4, rtol=1e-4), max_err
    print("KERNEL_OK")
</pallas_src>

<mosaic_0001>
module attributes {stable_mosaic.version = 11 : i64} {
  func.func @probe(%arg0: memref<8x128xf32, #tpu.memory_space<vmem>>, %arg1: memref<8x128xf32, #tpu.memory_space<vmem>>) attributes {dimension_semantics = [], scalar_prefetch = 0 : i64, scratch_operands = 0 : i64, tpu.core_type = #tpu.core_type<tc>} {
    %c0 = arith.constant 0 : index
    %c0_0 = arith.constant 0 : index
    %0 = vector.load %arg0[%c0, %c0_0] : memref<8x128xf32, #tpu.memory_space<vmem>>, vector<8x128xf32>
    %c1_i32 = arith.constant 1 : i32
    %1 = tpu.dynamic_rotate %0 by %c1_i32 dim 1 : vector<8x128xf32>, i32 -> vector<8x128xf32>
    %c0_1 = arith.constant 0 : index
    %c0_2 = arith.constant 0 : index
    %2 = vector.load %arg1[%c0_1, %c0_2] : memref<8x128xf32, #tpu.memory_space<vmem>>, vector<8x128xf32>
    tpu.vector_store %arg1[%c0_1, %c0_2], %1 {strides = array<i32>} : memref<8x128xf32, #tpu.memory_space<vmem>>, vector<8x128xf32>,
    return
  }
}

</mosaic_0001>

<llo_original>
// kernel: tpu_custom_call.1
$region0: #{tpu_custom_call.1}
  #allocation0 [shape = 'u32[]', space=smem, size = 0x4, offset = 0x4, fixed_abs, tag = 'smem constant byte address 0x4 - core index']
  #allocation1 [shape = 'u32[144,128]{1,0:T(1,128)}', space=vmem, size = 0x12000, scoped, tag = 'internal scratch']
  %s0 = inlined_call_operand.hbm [shape: f32[8,128], index: 0, kind: input, shape index: {}]
  %s1 = inlined_call_operand.hbm [shape: f32[8,128], index: 1, kind: output, shape index: {}]
  %s2 = sld [smem:[#allocation0]]
  $region18: #{tpu_custom_call.1} parent=0
    _
  %s4 = ssub.s32 1, %s2
  %s5 = scalar_select 0, %s4, %s2
  $region1: #{tpu_custom_call.1} parent=0
    #allocation2 [shape = 'u8[4096]{0}', space=vmem, size = 0x1000, scoped, tag = 'input window, operand 0, single buffered']
    #allocation3 [shape = 's32[1]{0}', space=sflag, size = 0x4, scoped, tag = 'scoped memory for tpu_custom_call.1']
    #allocation4 [shape = 's32[1]{0}', space=sflag, size = 0x4, scoped, tag = 'scoped memory for tpu_custom_call.1']
    #allocation5 [shape = 'u8[4096]{0}', space=vmem, size = 0x1000, scoped, tag = 'output window, operand 0, single buffered']
    %6 = vsyncpa [#allocation3], 0
    %7 = vsyncpa [#allocation4], 0
    // Predicated region
    $region2: #{tpu_custom_call.1} parent=1 // pred_check
      _
    $region3: #{tpu_custom_call.1} parent=1 // pred_check_branch
      %9 = sbr.rel (0) target = $region5
    $region4: #{tpu_custom_call.1} parent=1 // pred_region
      %s11 = ssub.s32 128, 128
      %12 = vsyncadd [#allocation3], %s11
      %s14 = sshll.u32 [#allocation2], 4
      %s15 = int_to_ptr.vmem [resolvable:$true] %s14
      %17 = dma.hbm_to_vmem [thread:$0]  %s0, 128, %s15, [#allocation3]
    $region5: #{tpu_custom_call.1} parent=1 // pred_fallthru
      _
    // Predicated region
    $region6: #{tpu_custom_call.1} parent=1 // pred_check
      _
    $region7: #{tpu_custom_call.1} parent=1 // pred_check_branch
      %19 = sbr.rel (0) target = $region9
    $region8: #{tpu_custom_call.1} parent=1 // pred_region
      %20 = dma.done [#allocation3], 128
    $region9: #{tpu_custom_call.1} parent=1 // pred_fallthru
      _
    %v21 = vld [vmem:[#allocation2] sm:$0xff]
    %22 = vrot.lane.b32.xlu0 %v21, 1
    %v23 = vpop.permute.xlu0 %22
    %24 = vst [vmem:[#allocation5] sm:$0xff] %v23
    // Predicated region
    $region10: #{tpu_custom_call.1} parent=1 // pred_check
      _
    $region11: #{tpu_custom_call.1} parent=1 // pred_check_branch
      %26 = sbr.rel (0) target = $region13
    $region12: #{tpu_custom_call.1} parent=1 // pred_region
      %s28 = ssub.s32 128, 128
      %29 = vsyncadd [#allocation4], %s28
      %s31 = sshll.u32 [#allocation5], 4
      %s32 = int_to_ptr.vmem [resolvable:$true] %s31
      %34 = dma.vmem_to_hbm [thread:$0]  %s32, 128, %s1, [#allocation4]
    $region13: #{tpu_custom_call.1} parent=1 // pred_fallthru
      _
    // Predicated region
    $region14: #{tpu_custom_call.1} parent=1 // pred_check
      _
    $region15: #{tpu_custom_call.1} parent=1 // pred_check_branch
      %36 = sbr.rel (0) target = $region17
    $region16: #{tpu_custom_call.1} parent=1 // pred_region
      %37 = dma.done [#allocation4], 128
    $region17: #{tpu_custom_call.1} parent=1 // pred_fallthru
      _
    %38 = vsyncpa [#allocation3], 1
    %39 = vsyncpa [#allocation4], 1

</llo_original>
